<compile_context>
chip_gen: v5e
topology: v5e:2x2
jax: 0.10.0
libtpu: 0.0.40
codegen_flags: <defaults>
</compile_context>

<pallas_src>
import jax
import jax.numpy as jnp
import numpy as np
from jax.experimental import pallas as pl
from jax.experimental.pallas import tpu as pltpu


def fused_unet_block_kernel(x_ref, w1_ref, w2_ref, vec_ref, o_ref):
    """Fused (conv+bias+ReLU+BN1) -> (conv+bias+ReLU+Dropout(eval)+BN2).

    Shapes (one grid step, B images of height H, channels fastest on lanes):
      x_ref  : (B, H, W*Cin)        bf16 input rows
      w1_ref : (3*W*Cin,  W*Cout)   bf16 K-stacked banded conv1 weights
      w2_ref : (3*W*Cout, W*Cout)   bf16 K-stacked banded conv2 weights
      vec_ref: (8, W*Cout) f32      rows: b1, bn1_scale, bn1_shift,
                                          b2, bn2_scale, bn2_shift, 0, 0
      o_ref  : (B, H, W*Cout)       output rows
    """
    b, h, wc_in = x_ref.shape
    wc_out = o_ref.shape[2]
    m = b * h

    def stacked_lhs(t):
        # [rows shifted down | rows | rows shifted up] concatenated on lanes,
        # with a zero row at every image boundary (== the conv's H zero pad).
        z = jnp.zeros((1, t.shape[1]), dtype=t.dtype)
        ups, dns = [], []
        for i in range(b):                       # static Python loop, B is small
            img = t[i * h:(i + 1) * h]
            ups += [z, img[:h - 1]]              # row r holds t[r-1], 0 at h==0
            dns += [img[1:], z]                  # row r holds t[r+1], 0 at h==H-1
        up = jnp.concatenate(ups, axis=0)
        dn = jnp.concatenate(dns, axis=0)
        return jnp.concatenate([up, t, dn], axis=1)      # (m, 3*width)

    vec = vec_ref[...]
    b1, sc1, sh1 = vec[0:1], vec[1:2], vec[2:3]
    b2, sc2, sh2 = vec[3:4], vec[4:5], vec[5:6]

    x = x_ref[...].reshape(m, wc_in)                     # bf16 MXU operand

    # ---- stage 1: conv3x3(pad=1) + bias + ReLU + BatchNorm1 (eval affine) ----
    acc1 = jnp.dot(stacked_lhs(x), w1_ref[...],
                   preferred_element_type=jnp.float32)   # (m, wc_out) f32
    u = jnp.maximum(acc1 + b1, 0.0) * sc1 + sh1          # f32 epilogue on the VPU

    # ---- stage 2: conv3x3(pad=1) + bias + ReLU + Dropout2d(eval) + BatchNorm2 ----
    acc2 = jnp.dot(stacked_lhs(u.astype(w2_ref.dtype)), w2_ref[...],
                   preferred_element_type=jnp.float32)
    y = jnp.maximum(acc2 + b2, 0.0)          # Dropout2d(p=0.15): identity in eval
    y = y * sc2 + sh2
    o_ref[...] = y.reshape(b, h, wc_out).astype(o_ref.dtype)


def _stacked_band_weights(w_hwio, width):
    """(3,3,Ci,Co) HWIO conv weights -> (3*width*Ci, width*Co) K-stacked bands.

    band[kh][(c+kw-1)*Ci + ci, c*Co + co] = w[kh, kw, ci, co] for
    0 <= c+kw-1 < width; out-of-range taps stay zero (the W-axis zero padding).
    The three kh bands are stacked along K so the whole 3x3 conv is a single
    matmul against the [row-1 | row | row+1] lane-concatenated LHS.
    """
    _, _, ci, co = w_hwio.shape
    w_np = np.asarray(w_hwio, dtype=np.float32)
    band = np.zeros((3, width * ci, width * co), np.float32)
    for kh in range(3):
        for kw in range(3):
            for col in range(width):
                src = col + kw - 1
                if 0 <= src < width:
                    band[kh, src * ci:(src + 1) * ci,
                         col * co:(col + 1) * co] = w_np[kh, kw]
    return band.reshape(3 * width * ci, width * co)


def prepare_kernel_params(params, width):
    """Band/stack the conv weights; pack all epilogue vectors into one array."""
    cout = params["w1"].shape[-1]

    def lane_tile(v):
        return np.tile(np.asarray(v, np.float32), width)   # (width*cout,)

    vec = np.zeros((8, width * cout), np.float32)           # pad to 8 sublanes
    vec[0] = lane_tile(params["b1"])
    vec[1] = lane_tile(params["bn1_scale"])
    vec[2] = lane_tile(params["bn1_shift"])
    vec[3] = lane_tile(params["b2"])
    vec[4] = lane_tile(params["bn2_scale"])
    vec[5] = lane_tile(params["bn2_shift"])

    return dict(
        w1=jnp.asarray(_stacked_band_weights(params["w1"], width), jnp.bfloat16),
        w2=jnp.asarray(_stacked_band_weights(params["w2"], width), jnp.bfloat16),
        vec=jnp.asarray(vec),
    )


def unet_conv_block(x_nchw, kp, cout, *, images_per_block=None,
                    out_dtype=jnp.float32, lane_layout_out=False):
    """UNetConvBlock(padding=True, eval mode) forward via one Pallas call.

    images_per_block: images per grid step. Default = whole batch in a single
      grid step (best on single-TensorCore v5e/v6e). On v7x pass N//2 so each
      TensorCore gets half the batch.
    lane_layout_out: return the (N, H, W*Cout) lane-dense activation (to chain
      into another block without NCHW round trips) instead of NCHW.
    """
    n, cin, h, w = x_nchw.shape
    wc_in, wc_out = w * cin, w * cout
    if images_per_block is None:
        images_per_block = n
    assert n % images_per_block == 0, "batch must divide evenly into grid blocks"
    assert wc_out % 128 == 0, "W*Cout must be a multiple of 128 (lane-dense output)"
    assert h % 8 == 0, "H must be a multiple of 8 (sublane tiling)"
    grid = (n // images_per_block,)

    # NCHW -> (N, H, W*Cin) channels-fastest lane layout, bf16 MXU operands.
    x_lanes = (jnp.transpose(x_nchw, (0, 2, 3, 1))
               .reshape(n, h, wc_in).astype(jnp.bfloat16))

    flops = 2 * n * h * (3 * wc_in * wc_out + 3 * wc_out * wc_out)
    bytes_accessed = (n * h * wc_in * 2 + 3 * wc_in * wc_out * 2
                      + 3 * wc_out * wc_out * 2 + 8 * wc_out * 4
                      + n * h * wc_out * jnp.dtype(out_dtype).itemsize)

    out = pl.pallas_call(
        fused_unet_block_kernel,
        out_shape=jax.ShapeDtypeStruct((n, h, wc_out), out_dtype),
        grid=grid,
        in_specs=[
            pl.BlockSpec((images_per_block, h, wc_in), lambda i: (i, 0, 0)),
            pl.BlockSpec((3 * wc_in, wc_out), lambda i: (0, 0)),   # grid-invariant
            pl.BlockSpec((3 * wc_out, wc_out), lambda i: (0, 0)),  # grid-invariant
            pl.BlockSpec((8, wc_out), lambda i: (0, 0)),
        ],
        out_specs=pl.BlockSpec((images_per_block, h, wc_out), lambda i: (i, 0, 0)),
        compiler_params=pltpu.CompilerParams(
            dimension_semantics=("parallel",)),   # grid=(1,) by default; 2 TCs if split
        cost_estimate=pl.CostEstimate(flops=flops, transcendentals=0,
                                      bytes_accessed=bytes_accessed),
    )(x_lanes, kp["w1"], kp["w2"], kp["vec"])

    if lane_layout_out:
        return out
    return jnp.transpose(out.reshape(n, h, w, cout), (0, 3, 1, 2))


def init_params(key, in_size, out_size, batch_norm):
    """Deterministic synthetic parameters matching the module's shapes."""
    ks = jax.random.split(key, 10)
    eps = 1e-5

    def bn_affine(kg, kb, km, kv, c):
        gamma = jax.random.normal(kg, (c,), jnp.float32) * 0.1 + 1.0
        beta = jax.random.normal(kb, (c,), jnp.float32) * 0.1
        r_mean = jax.random.normal(km, (c,), jnp.float32) * 0.1
        r_var = jnp.abs(jax.random.normal(kv, (c,), jnp.float32)) * 0.1 + 0.9
        scale = gamma / jnp.sqrt(r_var + eps)
        shift = beta - r_mean * scale
        return scale, shift

    params = {}
    params["w1"] = jax.random.normal(ks[0], (3, 3, in_size, out_size),
                                     jnp.float32) * 0.1
    params["b1"] = jax.random.normal(ks[1], (out_size,), jnp.float32) * 0.1
    params["w2"] = jax.random.normal(ks[2], (3, 3, out_size, out_size),
                                     jnp.float32) * 0.1
    params["b2"] = jax.random.normal(ks[3], (out_size,), jnp.float32) * 0.1

    if batch_norm:
        params["bn1_scale"], params["bn1_shift"] = bn_affine(
            ks[4], ks[5], ks[6], ks[7], out_size)
        params["bn2_scale"], params["bn2_shift"] = bn_affine(
            ks[8], ks[9], ks[6], ks[7], out_size)
    else:
        ones = jnp.ones((out_size,), jnp.float32)
        zeros = jnp.zeros((out_size,), jnp.float32)
        params["bn1_scale"], params["bn1_shift"] = ones, zeros
        params["bn2_scale"], params["bn2_shift"] = ones, zeros
    return params


def reference_forward(x_nchw, params):
    """Plain-JAX reference with the module's literal op order (eval mode).

    Conv operands are cast to bf16 (f32 accumulation) to match the kernel's
    MXU input precision; the bias/ReLU/BN epilogues stay in f32.
    """
    x = jnp.transpose(x_nchw, (0, 2, 3, 1)).astype(jnp.float32)

    def conv(v, w, bias):
        y = jax.lax.conv_general_dilated(
            v.astype(jnp.bfloat16), w.astype(jnp.bfloat16),
            window_strides=(1, 1), padding="SAME",
            dimension_numbers=("NHWC", "HWIO", "NHWC"),
            preferred_element_type=jnp.float32)
        return y + bias.reshape(1, 1, 1, -1)

    y = jnp.maximum(conv(x, params["w1"], params["b1"]), 0.0)
    y = y * params["bn1_scale"].reshape(1, 1, 1, -1) + \
        params["bn1_shift"].reshape(1, 1, 1, -1)
    y = jnp.maximum(conv(y, params["w2"], params["b2"]), 0.0)
    # Dropout2d(p=0.15) is identity in eval mode.
    y = y * params["bn2_scale"].reshape(1, 1, 1, -1) + \
        params["bn2_shift"].reshape(1, 1, 1, -1)
    return jnp.transpose(y, (0, 3, 1, 2))


if __name__ == "__main__":
    key = jax.random.PRNGKey(0)
    k_x, k_p, k_p2 = jax.random.split(key, 3)

    # Config A: UNetConvBlock(in_size=4, out_size=8, padding=True, batch_norm=True)
    N, C_IN, C_OUT, H, W = 2, 4, 8, 16, 16
    x = jax.random.normal(k_x, (N, C_IN, H, W), jnp.float32)   # NCHW input
    params = init_params(k_p, C_IN, C_OUT, batch_norm=True)
    kp = prepare_kernel_params(params, width=W)
    ref = jax.block_until_ready(reference_forward(x, params))

    # Whole batch in one grid step (v5e/v6e default).
    out = jax.block_until_ready(unet_conv_block(x, kp, C_OUT))
    np.testing.assert_allclose(np.asarray(out), np.asarray(ref),
                               rtol=2e-2, atol=2e-2)
    assert out.shape == (N, C_OUT, H, W)

    # Same config, batch split across grid steps (v7x-style per-TensorCore split).
    out_split = jax.block_until_ready(
        unet_conv_block(x, kp, C_OUT, images_per_block=1))
    np.testing.assert_allclose(np.asarray(out_split), np.asarray(ref),
                               rtol=2e-2, atol=2e-2)

    # Config B: out_size=16 -> 256-wide lane layout (fills the v6e/v7x 256-wide MXU).
    C_OUT_B = 16
    params_b = init_params(k_p2, C_IN, C_OUT_B, batch_norm=True)
    kp_b = prepare_kernel_params(params_b, width=W)
    out_b = jax.block_until_ready(unet_conv_block(x, kp_b, C_OUT_B))
    ref_b = jax.block_until_ready(reference_forward(x, params_b))
    np.testing.assert_allclose(np.asarray(out_b), np.asarray(ref_b),
                               rtol=2e-2, atol=2e-2)
    assert out_b.shape == (N, C_OUT_B, H, W)

    print("KERNEL_OK")
</pallas_src>

<mosaic_0001>
module attributes {stable_mosaic.version = 11 : i64} {
  func.func @fused_unet_block_kernel(%arg0: i32, %arg1: memref<2x16x64xbf16, #tpu.memory_space<vmem>>, %arg2: memref<192x128xbf16, #tpu.memory_space<vmem>>, %arg3: memref<384x128xbf16, #tpu.memory_space<vmem>>, %arg4: memref<8x128xf32, #tpu.memory_space<vmem>>, %arg5: memref<2x16x128xf32, #tpu.memory_space<vmem>>) attributes {dimension_semantics = [#tpu.dimension_semantics<parallel>], iteration_bounds = array<i64: 1>, scalar_prefetch = 0 : i64, scratch_operands = 0 : i64, tpu.core_type = #tpu.core_type<tc>, window_params = [{transform_indices = @transform_0, window_bounds = array<i64: 2, 16, 64>}, {pipeline_mode = #tpu.pipeline_mode<synchronous>, transform_indices = @transform_1, window_bounds = array<i64: 192, 128>}, {pipeline_mode = #tpu.pipeline_mode<synchronous>, transform_indices = @transform_2, window_bounds = array<i64: 384, 128>}, {pipeline_mode = #tpu.pipeline_mode<synchronous>, transform_indices = @transform_3, window_bounds = array<i64: 8, 128>}, {transform_indices = @transform_4, window_bounds = array<i64: 2, 16, 128>}]} {
    %c0 = arith.constant 0 : index
    %c0_0 = arith.constant 0 : index
    %0 = vector.load %arg4[%c0, %c0_0] : memref<8x128xf32, #tpu.memory_space<vmem>>, vector<8x128xf32>
    %1 = vector.extract_strided_slice %0 {offsets = [0, 0], sizes = [1, 128], strides = [1, 1]} : vector<8x128xf32> to vector<1x128xf32>
    %2 = vector.extract_strided_slice %0 {offsets = [1, 0], sizes = [1, 128], strides = [1, 1]} : vector<8x128xf32> to vector<1x128xf32>
    %3 = vector.extract_strided_slice %0 {offsets = [2, 0], sizes = [1, 128], strides = [1, 1]} : vector<8x128xf32> to vector<1x128xf32>
    %4 = vector.extract_strided_slice %0 {offsets = [3, 0], sizes = [1, 128], strides = [1, 1]} : vector<8x128xf32> to vector<1x128xf32>
    %5 = vector.extract_strided_slice %0 {offsets = [4, 0], sizes = [1, 128], strides = [1, 1]} : vector<8x128xf32> to vector<1x128xf32>
    %6 = vector.extract_strided_slice %0 {offsets = [5, 0], sizes = [1, 128], strides = [1, 1]} : vector<8x128xf32> to vector<1x128xf32>
    %c0_1 = arith.constant 0 : index
    %c0_2 = arith.constant 0 : index
    %c0_3 = arith.constant 0 : index
    %7 = vector.load %arg1[%c0_1, %c0_2, %c0_3] : memref<2x16x64xbf16, #tpu.memory_space<vmem>>, vector<2x16x64xbf16>
    %8 = vector.shape_cast %7 : vector<2x16x64xbf16> to vector<32x64xbf16>
    %cst = arith.constant 0.000000e+00 : bf16
    %9 = vector.broadcast %cst : bf16 to vector<1x64xbf16>
    %10 = vector.extract_strided_slice %8 {offsets = [0, 0], sizes = [16, 64], strides = [1, 1]} : vector<32x64xbf16> to vector<16x64xbf16>
    %11 = vector.extract_strided_slice %10 {offsets = [0, 0], sizes = [15, 64], strides = [1, 1]} : vector<16x64xbf16> to vector<15x64xbf16>
    %12 = vector.extract_strided_slice %10 {offsets = [1, 0], sizes = [15, 64], strides = [1, 1]} : vector<16x64xbf16> to vector<15x64xbf16>
    %13 = vector.extract_strided_slice %8 {offsets = [16, 0], sizes = [16, 64], strides = [1, 1]} : vector<32x64xbf16> to vector<16x64xbf16>
    %14 = vector.extract_strided_slice %13 {offsets = [0, 0], sizes = [15, 64], strides = [1, 1]} : vector<16x64xbf16> to vector<15x64xbf16>
    %15 = vector.extract_strided_slice %13 {offsets = [1, 0], sizes = [15, 64], strides = [1, 1]} : vector<16x64xbf16> to vector<15x64xbf16>
    %16 = tpu.concatenate %9, %11, %9, %14 in 0 : vector<1x64xbf16>, vector<15x64xbf16>, vector<1x64xbf16>, vector<15x64xbf16> -> vector<32x64xbf16>
    %17 = tpu.concatenate %12, %9, %15, %9 in 0 : vector<15x64xbf16>, vector<1x64xbf16>, vector<15x64xbf16>, vector<1x64xbf16> -> vector<32x64xbf16>
    %18 = tpu.concatenate %16, %8, %17 in 1 : vector<32x64xbf16>, vector<32x64xbf16>, vector<32x64xbf16> -> vector<32x192xbf16>
    %c0_4 = arith.constant 0 : index
    %c0_5 = arith.constant 0 : index
    %19 = vector.load %arg2[%c0_4, %c0_5] : memref<192x128xbf16, #tpu.memory_space<vmem>>, vector<192x128xbf16>
    %cst_6 = arith.constant dense<0.000000e+00> : vector<32x128xf32>
    %20 = tpu.matmul %18, %19, %cst_6 {dimension_numbers = #tpu.dot_dimension_numbers<[1], [0], [0], [1], [0, 0, 1, 1], [], []>} : vector<32x192xbf16>, vector<192x128xbf16>, vector<32x128xf32> -> vector<32x128xf32>
    %21 = vector.broadcast %1 : vector<1x128xf32> to vector<32x128xf32>
    %22 = arith.addf %20, %21 : vector<32x128xf32>
    %cst_7 = arith.constant 0.000000e+00 : f32
    %23 = vector.broadcast %cst_7 : f32 to vector<32x128xf32>
    %24 = arith.maximumf %22, %23 : vector<32x128xf32>
    %25 = vector.broadcast %2 : vector<1x128xf32> to vector<32x128xf32>
    %26 = arith.mulf %24, %25 : vector<32x128xf32>
    %27 = vector.broadcast %3 : vector<1x128xf32> to vector<32x128xf32>
    %28 = arith.addf %26, %27 : vector<32x128xf32>
    %29 = arith.truncf %28 : vector<32x128xf32> to vector<32x128xbf16>
    %cst_8 = arith.constant 0.000000e+00 : bf16
    %30 = vector.broadcast %cst_8 : bf16 to vector<1x128xbf16>
    %31 = vector.extract_strided_slice %29 {offsets = [0, 0], sizes = [16, 128], strides = [1, 1]} : vector<32x128xbf16> to vector<16x128xbf16>
    %32 = vector.extract_strided_slice %31 {offsets = [0, 0], sizes = [15, 128], strides = [1, 1]} : vector<16x128xbf16> to vector<15x128xbf16>
    %33 = vector.extract_strided_slice %31 {offsets = [1, 0], sizes = [15, 128], strides = [1, 1]} : vector<16x128xbf16> to vector<15x128xbf16>
    %34 = vector.extract_strided_slice %29 {offsets = [16, 0], sizes = [16, 128], strides = [1, 1]} : vector<32x128xbf16> to vector<16x128xbf16>
    %35 = vector.extract_strided_slice %34 {offsets = [0, 0], sizes = [15, 128], strides = [1, 1]} : vector<16x128xbf16> to vector<15x128xbf16>
    %36 = vector.extract_strided_slice %34 {offsets = [1, 0], sizes = [15, 128], strides = [1, 1]} : vector<16x128xbf16> to vector<15x128xbf16>
    %37 = tpu.concatenate %30, %32, %30, %35 in 0 : vector<1x128xbf16>, vector<15x128xbf16>, vector<1x128xbf16>, vector<15x128xbf16> -> vector<32x128xbf16>
    %38 = tpu.concatenate %33, %30, %36, %30 in 0 : vector<15x128xbf16>, vector<1x128xbf16>, vector<15x128xbf16>, vector<1x128xbf16> -> vector<32x128xbf16>
    %39 = tpu.concatenate %37, %29, %38 in 1 : vector<32x128xbf16>, vector<32x128xbf16>, vector<32x128xbf16> -> vector<32x384xbf16>
    %c0_9 = arith.constant 0 : index
    %c0_10 = arith.constant 0 : index
    %40 = vector.load %arg3[%c0_9, %c0_10] : memref<384x128xbf16, #tpu.memory_space<vmem>>, vector<384x128xbf16>
    %cst_11 = arith.constant dense<0.000000e+00> : vector<32x128xf32>
    %41 = tpu.matmul %39, %40, %cst_11 {dimension_numbers = #tpu.dot_dimension_numbers<[1], [0], [0], [1], [0, 0, 1, 1], [], []>} : vector<32x384xbf16>, vector<384x128xbf16>, vector<32x128xf32> -> vector<32x128xf32>
    %42 = vector.broadcast %4 : vector<1x128xf32> to vector<32x128xf32>
    %43 = arith.addf %41, %42 : vector<32x128xf32>
    %cst_12 = arith.constant 0.000000e+00 : f32
    %44 = vector.broadcast %cst_12 : f32 to vector<32x128xf32>
    %45 = arith.maximumf %43, %44 : vector<32x128xf32>
    %46 = vector.broadcast %5 : vector<1x128xf32> to vector<32x128xf32>
    %47 = arith.mulf %45, %46 : vector<32x128xf32>
    %48 = vector.broadcast %6 : vector<1x128xf32> to vector<32x128xf32>
    %49 = arith.addf %47, %48 : vector<32x128xf32>
    %50 = vector.shape_cast %49 : vector<32x128xf32> to vector<2x16x128xf32>
    %c0_13 = arith.constant 0 : index
    %c0_14 = arith.constant 0 : index
    %c0_15 = arith.constant 0 : index
    %51 = vector.load %arg5[%c0_13, %c0_14, %c0_15] : memref<2x16x128xf32, #tpu.memory_space<vmem>>, vector<2x16x128xf32>
    tpu.vector_store %arg5[%c0_13, %c0_14, %c0_15], %50 {strides = array<i32>} : memref<2x16x128xf32, #tpu.memory_space<vmem>>, vector<2x16x128xf32>,
    return
  }
  func.func @transform_0(%arg0: i32) -> (i32, i32, i32) {
    %c0_i32 = arith.constant 0 : i32
    %c0_i32_0 = arith.constant 0 : i32
    %c0_i32_1 = arith.constant 0 : i32
    return %arg0, %c0_i32, %c0_i32_0 : i32, i32, i32
  }
  func.func @transform_1(%arg0: i32) -> (i32, i32) {
    %c0_i32 = arith.constant 0 : i32
    %c0_i32_0 = arith.constant 0 : i32
    %c0_i32_1 = arith.constant 0 : i32
    return %c0_i32, %c0_i32_0 : i32, i32
  }
  func.func @transform_2(%arg0: i32) -> (i32, i32) {
    %c0_i32 = arith.constant 0 : i32
    %c0_i32_0 = arith.constant 0 : i32
    %c0_i32_1 = arith.constant 0 : i32
    return %c0_i32, %c0_i32_0 : i32, i32
  }
  func.func @transform_3(%arg0: i32) -> (i32, i32) {
    %c0_i32 = arith.constant 0 : i32
    %c0_i32_0 = arith.constant 0 : i32
    %c0_i32_1 = arith.constant 0 : i32
    return %c0_i32, %c0_i32_0 : i32, i32
  }
  func.func @transform_4(%arg0: i32) -> (i32, i32, i32) {
    %c0_i32 = arith.constant 0 : i32
    %c0_i32_0 = arith.constant 0 : i32
    %c0_i32_1 = arith.constant 0 : i32
    return %arg0, %c0_i32, %c0_i32_0 : i32, i32, i32
  }
}

</mosaic_0001>

<llo_original>
// kernel: tpu_custom_call.1
$region0: #{tpu_custom_call.1}
  #allocation0 [shape = 'u32[]', space=smem, size = 0x4, offset = 0x4, fixed_abs, tag = 'smem constant byte address 0x4 - core index']
  #allocation1 [shape = 'u32[72,128]{1,0:T(1,128)}', space=vmem, size = 0x9000, scoped, tag = 'internal scratch']
  %s0 = inlined_call_operand.hbm [shape: bf16[2,16,64], index: 0, kind: input, shape index: {}]
  %s1 = inlined_call_operand.hbm [shape: bf16[192,128], index: 1, kind: input, shape index: {}]
  %s2 = inlined_call_operand.hbm [shape: bf16[384,128], index: 2, kind: input, shape index: {}]
  %s3 = inlined_call_operand.hbm [shape: f32[8,128], index: 3, kind: input, shape index: {}]
  %s4 = inlined_call_operand.hbm [shape: f32[2,16,128], index: 4, kind: output, shape index: {}]
  %s5 = sld [smem:[#allocation0]]
  $region42: #{tpu_custom_call.1} parent=0
    _
  %s7 = ssub.s32 1, %s5
  %s8 = scalar_select 0, %s7, %s5
  $region1: #{tpu_custom_call.1} parent=0
    #allocation2 [shape = 'u8[8192]{0}', space=vmem, size = 0x2000, scoped, tag = 'input window, operand 0, single buffered']
    #allocation3 [shape = 's32[1]{0}', space=sflag, size = 0x4, scoped, tag = 'scoped memory for tpu_custom_call.1']
    #allocation4 [shape = 's32[1]{0}', space=sflag, size = 0x4, scoped, tag = 'scoped memory for tpu_custom_call.1']
    #allocation5 [shape = 'u8[49152]{0}', space=vmem, size = 0xc000, scoped, tag = 'input window, operand 1, single buffered']
    #allocation6 [shape = 's32[1]{0}', space=sflag, size = 0x4, scoped, tag = 'scoped memory for tpu_custom_call.1']
    #allocation7 [shape = 'u8[98304]{0}', space=vmem, size = 0x18000, scoped, tag = 'input window, operand 2, single buffered']
    #allocation8 [shape = 'u8[4096]{0}', space=vmem, size = 0x1000, scoped, tag = 'input window, operand 3, single buffered']
    #allocation9 [shape = 's32[1]{0}', space=sflag, size = 0x4, scoped, tag = 'scoped memory for tpu_custom_call.1']
    #allocation10 [shape = 'u8[16384]{0}', space=vmem, size = 0x4000, scoped, tag = 'output window, operand 0, single buffered']
    %9 = vsyncpa [#allocation3], 0
    %10 = vsyncpa [#allocation6], 0
    %11 = vsyncpa [#allocation9], 0
    %12 = vsyncpa [#allocation4], 0
    // Predicated region
    $region2: #{tpu_custom_call.1} parent=1 // pred_check
      _
    $region3: #{tpu_custom_call.1} parent=1 // pred_check_branch
      %14 = sbr.rel (0) target = $region5
    $region4: #{tpu_custom_call.1} parent=1 // pred_region
      %16 = vsyncadd [#allocation3], 0
      %s17 = sshll.u32 %s0, 4
      %s18 = int_to_ptr.hbm [resolvable:$true] %s17
      %s19 = sshll.u32 [#allocation2], 4
      %s20 = int_to_ptr.vmem [resolvable:$true] %s19
      %25 = dma.hbm_to_vmem [thread:$0]  %s18, 256, %s20, [#allocation3], 64, 64, 4
    $region5: #{tpu_custom_call.1} parent=1 // pred_fallthru
      _
    // Predicated region
    $region6: #{tpu_custom_call.1} parent=1 // pred_check
      _
    $region7: #{tpu_custom_call.1} parent=1 // pred_check_branch
      %27 = sbr.rel (0) target = $region9
    $region8: #{tpu_custom_call.1} parent=1 // pred_region
      %29 = vsyncadd [#allocation6], 0
      %s30 = sshll.u32 %s1, 4
      %s31 = int_to_ptr.hbm [resolvable:$true] %s30
      %s32 = sshll.u32 [#allocation5], 4
      %s33 = int_to_ptr.vmem [resolvable:$true] %s32
      %38 = dma.hbm_to_vmem [thread:$0]  %s31, 1536, %s33, [#allocation6], 64, 64, 4
    $region9: #{tpu_custom_call.1} parent=1 // pred_fallthru
      _
    // Predicated region
    $region10: #{tpu_custom_call.1} parent=1 // pred_check
      _
    $region11: #{tpu_custom_call.1} parent=1 // pred_check_branch
      %40 = sbr.rel (0) target = $region13
    $region12: #{tpu_custom_call.1} parent=1 // pred_region
      %42 = vsyncadd [#allocation6], 0
      %s43 = sshll.u32 %s2, 4
      %s44 = int_to_ptr.hbm [resolvable:$true] %s43
      %s45 = sshll.u32 [#allocation7], 4
      %s46 = int_to_ptr.vmem [resolvable:$true] %s45
      %51 = dma.hbm_to_vmem [thread:$0]  %s44, 3072, %s46, [#allocation6], 64, 64, 4
    $region13: #{tpu_custom_call.1} parent=1 // pred_fallthru
      _
    // Predicated region
    $region14: #{tpu_custom_call.1} parent=1 // pred_check
      _
    $region15: #{tpu_custom_call.1} parent=1 // pred_check_branch
      %53 = sbr.rel (0) target = $region17
    $region16: #{tpu_custom_call.1} parent=1 // pred_region
      %55 = vsyncadd [#allocation9], 0
      %s57 = sshll.u32 %s3, 4
      %s58 = int_to_ptr.hbm [resolvable:$true] %s57
      %s59 = sshll.u32 [#allocation8], 4
      %s60 = int_to_ptr.vmem [resolvable:$true] %s59
      %62 = dma.hbm_to_vmem [thread:$0]  %s58, 128, %s60, [#allocation9]
    $region17: #{tpu_custom_call.1} parent=1 // pred_fallthru
      _
    // Predicated region
    $region18: #{tpu_custom_call.1} parent=1 // pred_check
      _
    $region19: #{tpu_custom_call.1} parent=1 // pred_check_branch
      %64 = sbr.rel (0) target = $region21
    $region20: #{tpu_custom_call.1} parent=1 // pred_region
      %66 = dma.done [#allocation3], 256
    $region21: #{tpu_custom_call.1} parent=1 // pred_fallthru
      _
    // Predicated region
    $region22: #{tpu_custom_call.1} parent=1 // pred_check
      _
    $region23: #{tpu_custom_call.1} parent=1 // pred_check_branch
      %68 = sbr.rel (0) target = $region25
    $region24: #{tpu_custom_call.1} parent=1 // pred_region
      %70 = dma.done [#allocation6], 1536
    $region25: #{tpu_custom_call.1} parent=1 // pred_fallthru
      _
    // Predicated region
    $region26: #{tpu_custom_call.1} parent=1 // pred_check
      _
    $region27: #{tpu_custom_call.1} parent=1 // pred_check_branch
      %72 = sbr.rel (0) target = $region29
    $region28: #{tpu_custom_call.1} parent=1 // pred_region
      %74 = dma.done [#allocation6], 3072
    $region29: #{tpu_custom_call.1} parent=1 // pred_fallthru
      _
    // Predicated region
    $region30: #{tpu_custom_call.1} parent=1 // pred_check
      _
    $region31: #{tpu_custom_call.1} parent=1 // pred_check_branch
      %76 = sbr.rel (0) target = $region33
    $region32: #{tpu_custom_call.1} parent=1 // pred_region
      %78 = dma.done [#allocation9], 128
    $region33: #{tpu_custom_call.1} parent=1 // pred_fallthru
      _
    %v80 = vld [vmem:[#allocation8] sm:$0xff]
    %v81 = vld [vmem:[#allocation2] sm:$0xf]
    %v82 = vld [vmem:[#allocation2 + $0x4] sm:$0xf]
    %v83 = vld [vmem:[#allocation2 + $0x8] sm:$0xf]
    %v84 = vld [vmem:[#allocation2 + $0xc] sm:$0xf]
    %v87 = vunpack.c.l.b16 %v81
    %v88 = vunpack.c.l.b16 %v82
    %v89 = vpack.c.b16 %v88, %v87
    %v91 = vshrl.u32 %v89, 16
    %v93 = vrot.slane %v91, 7
    %v94 = vshll.u32 %v89, 16
    %v96 = vor.u32 %v93, %v94
    %v100 = vunpack.c.l.b16 %v83
    %v101 = vunpack.c.l.b16 %v84
    %v102 = vpack.c.b16 %v101, %v100
    %v104 = vshrl.u32 %v102, 16
    %v106 = vrot.slane %v104, 7
    %v107 = vshll.u32 %v102, 16
    %v109 = vor.u32 %v106, %v107
    %vm111 = vcmask 1040384
    %vm112 = vsmask.f32 256
    %vm113 = vmand %vm111, %vm112
    %v114 = vsel %vm113, 0, %v96
    %v115 = vsel %vm113, 0, %v109
    %v116 = vrot.slane %v94, 1
    %v117 = vor.u32 %v91, %v116
    %v119 = vrot.slane %v107, 1
    %v120 = vor.u32 %v104, %v119
    %vm122 = vcmask 1047552
    %vm123 = vsmask.f32 7424
    %vm124 = vmand %vm122, %vm123
    %v125 = vsel %vm124, %v117, 0
    %v126 = vsel %vm124, %v120, 0
    %127 = vrot.lane.b32.xlu0 %v89, 64
    %v128 = vpop.permute.xlu0 %127
    %129 = vrot.lane.b32.xlu0 %v102, 64
    %v130 = vpop.permute.xlu0 %129
    %vm131 = vcmask 523264
    %v134 = vsel %vm131, %v114, %v128
    %v138 = vsel %vm131, %v115, %v130
    %v140 = vld [vmem:[#allocation5] sm:$0xf]
    %v141 = vld [vmem:[#allocation5 + $0x4] sm:$0xf]
    %v142 = vld [vmem:[#allocation5 + $0x8] sm:$0xf]
    %v143 = vld [vmem:[#allocation5 + $0xc] sm:$0xf]
    %v144 = vld [vmem:[#allocation5 + $0x10] sm:$0xf]
    %v145 = vld [vmem:[#allocation5 + $0x14] sm:$0xf]
    %v146 = vld [vmem:[#allocation5 + $0x18] sm:$0xf]
    %v147 = vld [vmem:[#allocation5 + $0x1c] sm:$0xf]
    %v148 = vld [vmem:[#allocation5 + $0x20] sm:$0xf]
    %v149 = vld [vmem:[#allocation5 + $0x24] sm:$0xf]
    %v150 = vld [vmem:[#allocation5 + $0x28] sm:$0xf]
    %v151 = vld [vmem:[#allocation5 + $0x2c] sm:$0xf]
    %v152 = vld [vmem:[#allocation5 + $0x30] sm:$0xf]
    %v153 = vld [vmem:[#allocation5 + $0x34] sm:$0xf]
    %v154 = vld [vmem:[#allocation5 + $0x38] sm:$0xf]
    %v155 = vld [vmem:[#allocation5 + $0x3c] sm:$0xf]
    %v156 = vld [vmem:[#allocation5 + $0x40] sm:$0xf]
    %v157 = vld [vmem:[#allocation5 + $0x44] sm:$0xf]
    %v158 = vld [vmem:[#allocation5 + $0x48] sm:$0xf]
    %v159 = vld [vmem:[#allocation5 + $0x4c] sm:$0xf]
    %v160 = vld [vmem:[#allocation5 + $0x50] sm:$0xf]
    %v161 = vld [vmem:[#allocation5 + $0x54] sm:$0xf]
    %v162 = vld [vmem:[#allocation5 + $0x58] sm:$0xf]
    %v163 = vld [vmem:[#allocation5 + $0x5c] sm:$0xf]
    %v164 = vperm.slane %v80, 0
    %v189 = vunpack.c.l.b16 %v140
    %v190 = vunpack.c.l.b16 %v141
    %v191 = vunpack.c.l.b16 %v142
    %v192 = vunpack.c.l.b16 %v143
    %v193 = vunpack.c.l.b16 %v144
    %v194 = vunpack.c.l.b16 %v145
    %v195 = vunpack.c.l.b16 %v146
    %v196 = vunpack.c.l.b16 %v147
    %v197 = vunpack.c.l.b16 %v148
    %v198 = vunpack.c.l.b16 %v149
    %v199 = vunpack.c.l.b16 %v150
    %v200 = vunpack.c.l.b16 %v151
    %v201 = vunpack.c.l.b16 %v152
    %v202 = vunpack.c.l.b16 %v153
    %v203 = vunpack.c.l.b16 %v154
    %v204 = vunpack.c.l.b16 %v155
    %v205 = vunpack.c.l.b16 %v156
    %v206 = vunpack.c.l.b16 %v157
    %v207 = vunpack.c.l.b16 %v158
    %v208 = vunpack.c.l.b16 %v159
    %v209 = vunpack.c.l.b16 %v160
    %v210 = vunpack.c.l.b16 %v161
    %v211 = vunpack.c.l.b16 %v162
    %v212 = vunpack.c.l.b16 %v163
    %v213 = vpack.c.b16 %v190, %v189
    %v214 = vpack.c.b16 %v192, %v191
    %v215 = vpack.c.b16 %v194, %v193
    %v216 = vpack.c.b16 %v196, %v195
    %v217 = vpack.c.b16 %v198, %v197
    %v218 = vpack.c.b16 %v200, %v199
    %v219 = vpack.c.b16 %v202, %v201
    %v220 = vpack.c.b16 %v204, %v203
    %v221 = vpack.c.b16 %v206, %v205
    %v222 = vpack.c.b16 %v208, %v207
    %v223 = vpack.c.b16 %v210, %v209
    %v224 = vpack.c.b16 %v212, %v211
    %v238 = vsel %vm131, %v125, 0
    %v241 = vsel %vm131, %v126, 0
    %243 = vmatpush.bf16.msra.mxu0 %v220
    %244 = vmatpush.bf16.msra.mxu0 %v219
    %245 = vmatpush.bf16.msra.mxu0 %v218
    %246 = vmatpush.bf16.msra.mxu0 %v217
    %247 = vmatpush.bf16.msra.mxu0 %v216
    %248 = vmatpush.bf16.msra.mxu0 %v215
    %249 = vmatpush.bf16.msra.mxu0 %v214
    %250 = vmatpush.bf16.msra.mxu0 %v213
    %251 = vmatmul.bf16.gmra.mxu0 %v134
    %v252 = vpop.f32.mrf.mxu0
    %v253 = vadd.f32 %v164, %v252
    %v254 = vpop.f32.mrf.mxu0
    %v255 = vadd.f32 %v164, %v254
    %256 = vmatmul.bf16.gmra.mxu0 %v138
    %v257 = vpop.f32.mrf.mxu0
    %v258 = vadd.f32 %v164, %v257
    %v259 = vpop.f32.mrf.mxu0
    %v260 = vadd.f32 %v164, %v259
    %261 = vdwg.mxu0
    %262 = vmatpush.bf16.msra.mxu0 0
    %263 = vmatpush.bf16.msra.mxu0 0
    %264 = vmatpush.bf16.msra.mxu0 0
    %265 = vmatpush.bf16.msra.mxu0 0
    %266 = vmatpush.bf16.msra.mxu0 %v224
    %267 = vmatpush.bf16.msra.mxu0 %v223
    %268 = vmatpush.bf16.msra.mxu0 %v222
    %269 = vmatpush.bf16.msra.mxu0 %v221
    %270 = vmatmul.bf16.gmra.mxu0 %v238
    %v271 = vpop.f32.mrf.mxu0
    %v272 = vadd.f32 %v253, %v271
    %v273 = vpop.f32.mrf.mxu0
    %v274 = vadd.f32 %v255, %v273
    %275 = vmatmul.bf16.gmra.mxu0 %v241
    %v276 = vpop.f32.mrf.mxu0
    %v277 = vadd.f32 %v258, %v276
    %v278 = vpop.f32.mrf.mxu0
    %v279 = vadd.f32 %v260, %v278
    %280 = vdwg.mxu0
    %v281 = vmax.f32 %v272, 0.0
    %v282 = vmax.f32 %v274, 0.0
    %v283 = vmax.f32 %v277, 0.0
    %v284 = vmax.f32 %v279, 0.0
    %v285 = vperm.slane %v80, 1
    %v286 = vmul.f32 %v281, %v285
    %v287 = vmul.f32 %v282, %v285
    %v288 = vmul.f32 %v283, %v285
    %v289 = vmul.f32 %v284, %v285
    %v290 = vperm.slane %v80, 2
    %v291 = vadd.f32 %v286, %v290
    %v292 = vadd.f32 %v287, %v290
    %v293 = vadd.f32 %v288, %v290
    %v294 = vadd.f32 %v289, %v290
    %v295 = vpack.c.bf16 %v291, %v291
    %v296 = vpack.c.bf16 %v292, %v292
    %v297 = vpack.c.bf16 %v293, %v293
    %v298 = vpack.c.bf16 %v294, %v294
    %v301 = vunpack.c.l.b16 %v295
    %v302 = vunpack.c.l.b16 %v296
    %v303 = vpack.c.b16 %v302, %v301
    %v305 = vshrl.u32 %v303, 16
    %v307 = vrot.slane %v305, 7
    %v308 = vshll.u32 %v303, 16
    %v310 = vor.u32 %v307, %v308
    %v314 = vunpack.c.l.b16 %v297
    %v315 = vunpack.c.l.b16 %v298
    %v316 = vpack.c.b16 %v315, %v314
    %v318 = vshrl.u32 %v316, 16
    %v320 = vrot.slane %v318, 7
    %v321 = vshll.u32 %v316, 16
    %v323 = vor.u32 %v320, %v321
    %v325 = vsel %vm113, 0, %v310
    %v326 = vsel %vm113, 0, %v323
    %v327 = vrot.slane %v308, 1
    %v328 = vor.u32 %v305, %v327
    %v330 = vrot.slane %v321, 1
    %v331 = vor.u32 %v318, %v330
    %v333 = vsel %vm124, %v328, 0
    %v334 = vsel %vm124, %v331, 0
    %v337 = vld [vmem:[#allocation7] sm:$0xf]
    %v338 = vld [vmem:[#allocation7 + $0x4] sm:$0xf]
    %v339 = vld [vmem:[#allocation7 + $0x8] sm:$0xf]
    %v340 = vld [vmem:[#allocation7 + $0xc] sm:$0xf]
    %v341 = vld [vmem:[#allocation7 + $0x10] sm:$0xf]
    %v342 = vld [vmem:[#allocation7 + $0x14] sm:$0xf]
    %v343 = vld [vmem:[#allocation7 + $0x18] sm:$0xf]
    %v344 = vld [vmem:[#allocation7 + $0x1c] sm:$0xf]
    %v345 = vld [vmem:[#allocation7 + $0x20] sm:$0xf]
    %v346 = vld [vmem:[#allocation7 + $0x24] sm:$0xf]
    %v347 = vld [vmem:[#allocation7 + $0x28] sm:$0xf]
    %v348 = vld [vmem:[#allocation7 + $0x2c] sm:$0xf]
    %v349 = vld [vmem:[#allocation7 + $0x30] sm:$0xf]
    %v350 = vld [vmem:[#allocation7 + $0x34] sm:$0xf]
    %v351 = vld [vmem:[#allocation7 + $0x38] sm:$0xf]
    %v352 = vld [vmem:[#allocation7 + $0x3c] sm:$0xf]
    %v353 = vld [vmem:[#allocation7 + $0x40] sm:$0xf]
    %v354 = vld [vmem:[#allocation7 + $0x44] sm:$0xf]
    %v355 = vld [vmem:[#allocation7 + $0x48] sm:$0xf]
    %v356 = vld [vmem:[#allocation7 + $0x4c] sm:$0xf]
    %v357 = vld [vmem:[#allocation7 + $0x50] sm:$0xf]
    %v358 = vld [vmem:[#allocation7 + $0x54] sm:$0xf]
    %v359 = vld [vmem:[#allocation7 + $0x58] sm:$0xf]
    %v360 = vld [vmem:[#allocation7 + $0x5c] sm:$0xf]
    %v361 = vld [vmem:[#allocation7 + $0x60] sm:$0xf]
    %v362 = vld [vmem:[#allocation7 + $0x64] sm:$0xf]
    %v363 = vld [vmem:[#allocation7 + $0x68] sm:$0xf]
    %v364 = vld [vmem:[#allocation7 + $0x6c] sm:$0xf]
    %v365 = vld [vmem:[#allocation7 + $0x70] sm:$0xf]
    %v366 = vld [vmem:[#allocation7 + $0x74] sm:$0xf]
    %v367 = vld [vmem:[#allocation7 + $0x78] sm:$0xf]
    %v368 = vld [vmem:[#allocation7 + $0x7c] sm:$0xf]
    %v369 = vld [vmem:[#allocation7 + $0x80] sm:$0xf]
    %v370 = vld [vmem:[#allocation7 + $0x84] sm:$0xf]
    %v371 = vld [vmem:[#allocation7 + $0x88] sm:$0xf]
    %v372 = vld [vmem:[#allocation7 + $0x8c] sm:$0xf]
    %v373 = vld [vmem:[#allocation7 + $0x90] sm:$0xf]
    %v374 = vld [vmem:[#allocation7 + $0x94] sm:$0xf]
    %v375 = vld [vmem:[#allocation7 + $0x98] sm:$0xf]
    %v376 = vld [vmem:[#allocation7 + $0x9c] sm:$0xf]
    %v377 = vld [vmem:[#allocation7 + $0xa0] sm:$0xf]
    %v378 = vld [vmem:[#allocation7 + $0xa4] sm:$0xf]
    %v379 = vld [vmem:[#allocation7 + $0xa8] sm:$0xf]
    %v380 = vld [vmem:[#allocation7 + $0xac] sm:$0xf]
    %v381 = vld [vmem:[#allocation7 + $0xb0] sm:$0xf]
    %v382 = vld [vmem:[#allocation7 + $0xb4] sm:$0xf]
    %v383 = vld [vmem:[#allocation7 + $0xb8] sm:$0xf]
    %v384 = vld [vmem:[#allocation7 + $0xbc] sm:$0xf]
    %v385 = vperm.slane %v80, 3
    %v434 = vunpack.c.l.b16 %v337
    %v435 = vunpack.c.l.b16 %v338
    %v436 = vunpack.c.l.b16 %v339
    %v437 = vunpack.c.l.b16 %v340
    %v438 = vunpack.c.l.b16 %v341
    %v439 = vunpack.c.l.b16 %v342
    %v440 = vunpack.c.l.b16 %v343
    %v441 = vunpack.c.l.b16 %v344
    %v442 = vunpack.c.l.b16 %v345
    %v443 = vunpack.c.l.b16 %v346
    %v444 = vunpack.c.l.b16 %v347
    %v445 = vunpack.c.l.b16 %v348
    %v446 = vunpack.c.l.b16 %v349
    %v447 = vunpack.c.l.b16 %v350
    %v448 = vunpack.c.l.b16 %v351
    %v449 = vunpack.c.l.b16 %v352
    %v450 = vunpack.c.l.b16 %v353
    %v451 = vunpack.c.l.b16 %v354
    %v452 = vunpack.c.l.b16 %v355
    %v453 = vunpack.c.l.b16 %v356
    %v454 = vunpack.c.l.b16 %v357
    %v455 = vunpack.c.l.b16 %v358
    %v456 = vunpack.c.l.b16 %v359
    %v457 = vunpack.c.l.b16 %v360
    %v458 = vunpack.c.l.b16 %v361
    %v459 = vunpack.c.l.b16 %v362
    %v460 = vunpack.c.l.b16 %v363
    %v461 = vunpack.c.l.b16 %v364
    %v462 = vunpack.c.l.b16 %v365
    %v463 = vunpack.c.l.b16 %v366
    %v464 = vunpack.c.l.b16 %v367
    %v465 = vunpack.c.l.b16 %v368
    %v466 = vunpack.c.l.b16 %v369
    %v467 = vunpack.c.l.b16 %v370
    %v468 = vunpack.c.l.b16 %v371
    %v469 = vunpack.c.l.b16 %v372
    %v470 = vunpack.c.l.b16 %v373
    %v471 = vunpack.c.l.b16 %v374
    %v472 = vunpack.c.l.b16 %v375
    %v473 = vunpack.c.l.b16 %v376
    %v474 = vunpack.c.l.b16 %v377
    %v475 = vunpack.c.l.b16 %v378
    %v476 = vunpack.c.l.b16 %v379
    %v477 = vunpack.c.l.b16 %v380
    %v478 = vunpack.c.l.b16 %v381
    %v479 = vunpack.c.l.b16 %v382
    %v480 = vunpack.c.l.b16 %v383
    %v481 = vunpack.c.l.b16 %v384
    %v482 = vpack.c.b16 %v435, %v434
    %v483 = vpack.c.b16 %v437, %v436
    %v484 = vpack.c.b16 %v439, %v438
    %v485 = vpack.c.b16 %v441, %v440
    %v486 = vpack.c.b16 %v443, %v442
    %v487 = vpack.c.b16 %v445, %v444
    %v488 = vpack.c.b16 %v447, %v446
    %v489 = vpack.c.b16 %v449, %v448
    %v490 = vpack.c.b16 %v451, %v450
    %v491 = vpack.c.b16 %v453, %v452
    %v492 = vpack.c.b16 %v455, %v454
    %v493 = vpack.c.b16 %v457, %v456
    %v494 = vpack.c.b16 %v459, %v458
    %v495 = vpack.c.b16 %v461, %v460
    %v496 = vpack.c.b16 %v463, %v462
    %v497 = vpack.c.b16 %v465, %v464
    %v498 = vpack.c.b16 %v467, %v466
    %v499 = vpack.c.b16 %v469, %v468
    %v500 = vpack.c.b16 %v471, %v470
    %v501 = vpack.c.b16 %v473, %v472
    %v502 = vpack.c.b16 %v475, %v474
    %v503 = vpack.c.b16 %v477, %v476
    %v504 = vpack.c.b16 %v479, %v478
    %v505 = vpack.c.b16 %v481, %v480
    %530 = vmatpush.bf16.msra.mxu0 %v489
    %531 = vmatpush.bf16.msra.mxu0 %v488
    %532 = vmatpush.bf16.msra.mxu0 %v487
    %533 = vmatpush.bf16.msra.mxu0 %v486
    %534 = vmatpush.bf16.msra.mxu0 %v485
    %535 = vmatpush.bf16.msra.mxu0 %v484
    %536 = vmatpush.bf16.msra.mxu0 %v483
    %537 = vmatpush.bf16.msra.mxu0 %v482
    %538 = vmatmul.bf16.gmra.mxu0 %v325
    %v539 = vpop.f32.mrf.mxu0
    %v540 = vadd.f32 %v385, %v539
    %v541 = vpop.f32.mrf.mxu0
    %v542 = vadd.f32 %v385, %v541
    %543 = vmatmul.bf16.gmra.mxu0 %v326
    %v544 = vpop.f32.mrf.mxu0
    %v545 = vadd.f32 %v385, %v544
    %v546 = vpop.f32.mrf.mxu0
    %v547 = vadd.f32 %v385, %v546
    %548 = vdwg.mxu0
    %549 = vmatpush.bf16.msra.mxu0 %v497
    %550 = vmatpush.bf16.msra.mxu0 %v496
    %551 = vmatpush.bf16.msra.mxu0 %v495
    %552 = vmatpush.bf16.msra.mxu0 %v494
    %553 = vmatpush.bf16.msra.mxu0 %v493
    %554 = vmatpush.bf16.msra.mxu0 %v492
    %555 = vmatpush.bf16.msra.mxu0 %v491
    %556 = vmatpush.bf16.msra.mxu0 %v490
    %557 = vmatmul.bf16.gmra.mxu0 %v303
    %v558 = vpop.f32.mrf.mxu0
    %v559 = vadd.f32 %v540, %v558
    %v560 = vpop.f32.mrf.mxu0
    %v561 = vadd.f32 %v542, %v560
    %562 = vmatmul.bf16.gmra.mxu0 %v316
    %v563 = vpop.f32.mrf.mxu0
    %v564 = vadd.f32 %v545, %v563
    %v565 = vpop.f32.mrf.mxu0
    %v566 = vadd.f32 %v547, %v565
    %567 = vdwg.mxu0
    %568 = vmatpush.bf16.msra.mxu0 %v505
    %569 = vmatpush.bf16.msra.mxu0 %v504
    %570 = vmatpush.bf16.msra.mxu0 %v503
    %571 = vmatpush.bf16.msra.mxu0 %v502
    %572 = vmatpush.bf16.msra.mxu0 %v501
    %573 = vmatpush.bf16.msra.mxu0 %v500
    %574 = vmatpush.bf16.msra.mxu0 %v499
    %575 = vmatpush.bf16.msra.mxu0 %v498
    %576 = vmatmul.bf16.gmra.mxu0 %v333
    %v577 = vpop.f32.mrf.mxu0
    %v578 = vadd.f32 %v559, %v577
    %v579 = vpop.f32.mrf.mxu0
    %v580 = vadd.f32 %v561, %v579
    %581 = vmatmul.bf16.gmra.mxu0 %v334
    %v582 = vpop.f32.mrf.mxu0
    %v583 = vadd.f32 %v564, %v582
    %v584 = vpop.f32.mrf.mxu0
    %v585 = vadd.f32 %v566, %v584
    %586 = vdwg.mxu0
    %v587 = vmax.f32 %v578, 0.0
    %v588 = vmax.f32 %v580, 0.0
    %v589 = vmax.f32 %v583, 0.0
    %v590 = vmax.f32 %v585, 0.0
    %v591 = vperm.slane %v80, 4
    %v592 = vmul.f32 %v587, %v591
    %v593 = vmul.f32 %v588, %v591
    %v594 = vmul.f32 %v589, %v591
    %v595 = vmul.f32 %v590, %v591
    %v596 = vperm.slane %v80, 5
    %v597 = vadd.f32 %v592, %v596
    %v598 = vadd.f32 %v593, %v596
    %v599 = vadd.f32 %v594, %v596
    %v600 = vadd.f32 %v595, %v596
    %601 = vst [vmem:[#allocation10] sm:$0xff] %v597
    %602 = vst [vmem:[#allocation10 + $0x8] sm:$0xff] %v598
    %603 = vst [vmem:[#allocation10 + $0x10] sm:$0xff] %v599
    %604 = vst [vmem:[#allocation10 + $0x18] sm:$0xff] %v600
    // Predicated region
    $region34: #{tpu_custom_call.1} parent=1 // pred_check
      _
    $region35: #{tpu_custom_call.1} parent=1 // pred_check_branch
      %606 = sbr.rel (0) target = $region37
    $region36: #{tpu_custom_call.1} parent=1 // pred_region
      %608 = vsyncadd [#allocation4], 0
      %s609 = sshll.u32 [#allocation10], 4
      %s610 = int_to_ptr.vmem [resolvable:$true] %s609
      %s611 = sshll.u32 %s4, 4
      %s612 = int_to_ptr.hbm [resolvable:$true] %s611
      %617 = dma.vmem_to_hbm [thread:$0]  %s610, 512, %s612, [#allocation4], 128, 128, 8
    $region37: #{tpu_custom_call.1} parent=1 // pred_fallthru
      _
    // Predicated region
    $region38: #{tpu_custom_call.1} parent=1 // pred_check
      _
    $region39: #{tpu_custom_call.1} parent=1 // pred_check_branch
      %619 = sbr.rel (0) target = $region41
    $region40: #{tpu_custom_call.1} parent=1 // pred_region
      %621 = dma.done [#allocation4], 512
    $region41: #{tpu_custom_call.1} parent=1 // pred_fallthru
      _
    %622 = vsyncpa [#allocation3], 1
    %623 = vsyncpa [#allocation6], 1
    %624 = vsyncpa [#allocation9], 1
    %625 = vsyncpa [#allocation4], 1

</llo_original>
